<compile_context>
chip_gen: v5e
topology: v5e:2x2
jax: 0.10.0
libtpu: 0.0.40
codegen_flags: <defaults>
</compile_context>

<pallas_src>
import functools

import jax
import jax.numpy as jnp
from jax import lax
from jax.experimental import pallas as pl
from jax.experimental.pallas import tpu as pltpu


def _round_up(x, m):
    return (x + m - 1) // m * m


def rnn_kernel(xw_ref, v_ref, hseq_ref, h_scratch, *, t_chunk):
    """One grid step advances the recurrence by `t_chunk` timesteps.

    xw_ref:   (Tc, Bp, Hp)  precomputed x_t @ W^T + (b_W + b_V)
    v_ref:    (Hp, Hp)      V^T (loop-invariant, constant block index)
    hseq_ref: (Tc, Bp, Hp)  hidden states for this chunk
    h_scratch:(Bp, Hp)      hidden state carried across grid steps
    """
    # h_0 = 0 at the very first chunk.
    @pl.when(pl.program_id(0) == 0)
    def _():
        h_scratch[...] = jnp.zeros_like(h_scratch)

    def step(t, h_prev):
        # h_t = tanh( (x_t W^T + b) + h_{t-1} V^T ) -- only the V matmul is
        # recurrent; the x projection was hoisted into the prepass.
        h_new = jnp.tanh(
            xw_ref[t]
            + jnp.dot(h_prev, v_ref[...], preferred_element_type=jnp.float32)
        )
        hseq_ref[t] = h_new.astype(hseq_ref.dtype)   # full (8,128)-tile store
        return h_new

    # Unrolled so the LLO scheduler can overlap the chunk's work.
    h_last = lax.fori_loop(0, t_chunk, step, h_scratch[...], unroll=True)
    h_scratch[...] = h_last


@functools.partial(jax.jit, static_argnames=("t_chunk",))
def rnn_forward(x, W, b_W, V, b_V, *, t_chunk=8):
    """x: (T, B, I); W: (H, I); b_W: (H,); V: (H, H); b_V: (H,).

    Returns (h_seq: (T, B, H), h_final: (B, H)).
    """
    T, B, I = x.shape
    H = W.shape[0]
    f32 = jnp.float32

    x = x.astype(f32)
    Wt = jnp.asarray(W, f32).T                       # (I, H)
    Vt = jnp.asarray(V, f32).T                       # (H, H)
    bias = (jnp.asarray(b_W, f32) + jnp.asarray(b_V, f32)).reshape(1, H)

    # ---- Prepass: non-recurrent input projection as one large MXU matmul ----
    xw = (x.reshape(T * B, I) @ Wt + bias).reshape(T, B, H)

    # ---- Pad to TPU-friendly tiles (exact, see header comment) ----
    Tc = max(1, min(t_chunk, T))
    Tp = _round_up(T, Tc)
    Bp = _round_up(max(B, 8), 8)            # f32 sublane granularity
    Hp = _round_up(max(H, 128), 128)        # lane-dense (unmasked vst)

    xw_p = jnp.zeros((Tp, Bp, Hp), f32).at[:T, :B, :H].set(xw)
    Vt_p = jnp.zeros((Hp, Hp), f32).at[:H, :H].set(Vt)

    hseq_p = pl.pallas_call(
        functools.partial(rnn_kernel, t_chunk=Tc),
        out_shape=jax.ShapeDtypeStruct((Tp, Bp, Hp), f32),
        grid_spec=pltpu.PrefetchScalarGridSpec(
            num_scalar_prefetch=0,
            grid=(Tp // Tc,),               # sequential over time chunks
            in_specs=[
                pl.BlockSpec((Tc, Bp, Hp), lambda c: (c, 0, 0)),  # xw chunk
                pl.BlockSpec((Hp, Hp), lambda c: (0, 0)),         # V^T (resident)
            ],
            out_specs=pl.BlockSpec((Tc, Bp, Hp), lambda c: (c, 0, 0)),
            scratch_shapes=[pltpu.VMEM((Bp, Hp), f32)],           # carried h
        ),
        compiler_params=pltpu.CompilerParams(
            dimension_semantics=("arbitrary",),   # recurrence => sequential
        ),
    )(xw_p, Vt_p)

    h_seq = hseq_p[:T, :B, :H]
    h_final = h_seq[T - 1]
    return h_seq, h_final


def rnn_reference(x, W, b_W, V, b_V):
    """Pure-JAX reference matching the PyTorch forward."""
    T, B, I = x.shape
    H = W.shape[0]
    h = jnp.zeros((B, H), jnp.float32)
    hs = []
    for t in range(T):
        h = jnp.tanh(x[t] @ W.T + b_W + h @ V.T + b_V)
        hs.append(h)
    return jnp.stack(hs), h


if __name__ == "__main__":
    # Small shapes consistent with the module's forward:
    # x: (seq_len, batch, input_size); hidden_size = H
    T, B, I, H = 8, 4, 8, 32

    key = jax.random.PRNGKey(0)
    kx, kw, kbw, kv, kbv = jax.random.split(key, 5)

    x = jax.random.normal(kx, (T, B, I), dtype=jnp.float32)
    # Deterministic parameter init (uniform, like nn.Linear's default range).
    W = jax.random.uniform(kw, (H, I), jnp.float32, -1.0 / (I ** 0.5), 1.0 / (I ** 0.5))
    b_W = jax.random.uniform(kbw, (H,), jnp.float32, -1.0 / (I ** 0.5), 1.0 / (I ** 0.5))
    V = jax.random.uniform(kv, (H, H), jnp.float32, -1.0 / (H ** 0.5), 1.0 / (H ** 0.5))
    b_V = jax.random.uniform(kbv, (H,), jnp.float32, -1.0 / (H ** 0.5), 1.0 / (H ** 0.5))

    h_seq, h_final = rnn_forward(x, W, b_W, V, b_V, t_chunk=8)
    h_seq = jax.block_until_ready(h_seq)
    h_final = jax.block_until_ready(h_final)

    h_seq_ref, h_final_ref = rnn_reference(x, W, b_W, V, b_V)
    assert h_seq.shape == (T, B, H)
    assert h_final.shape == (B, H)
    assert jnp.allclose(h_seq, h_seq_ref, atol=2e-5, rtol=2e-5)
    assert jnp.allclose(h_final, h_final_ref, atol=2e-5, rtol=2e-5)

    print("KERNEL_OK")
</pallas_src>

<mosaic_0001>
module attributes {stable_mosaic.version = 11 : i64} {
  func.func @rnn_kernel(%arg0: i32, %arg1: memref<8x8x128xf32, #tpu.memory_space<vmem>>, %arg2: memref<128x128xf32, #tpu.memory_space<vmem>>, %arg3: memref<8x8x128xf32, #tpu.memory_space<vmem>>, %arg4: memref<8x128xf32, #tpu.memory_space<vmem>>) attributes {dimension_semantics = [#tpu.dimension_semantics<arbitrary>], iteration_bounds = array<i64: 1>, scalar_prefetch = 0 : i64, scratch_operands = 1 : i64, tpu.core_type = #tpu.core_type<tc>, window_params = [{transform_indices = @transform_0, window_bounds = array<i64: 8, 8, 128>}, {pipeline_mode = #tpu.pipeline_mode<synchronous>, transform_indices = @transform_1, window_bounds = array<i64: 128, 128>}, {transform_indices = @transform_2, window_bounds = array<i64: 8, 8, 128>}]} {
    %c0_i32 = arith.constant 0 : i32
    %0 = arith.cmpi eq, %arg0, %c0_i32 : i32
    %1 = arith.extui %0 : i1 to i32
    %c0_i32_0 = arith.constant 0 : i32
    %2 = arith.cmpi ne, %1, %c0_i32_0 : i32
    scf.if %2 {
      %cst_60 = arith.constant 0.000000e+00 : f32
      %93 = vector.broadcast %cst_60 : f32 to vector<8x128xf32>
      %c0_61 = arith.constant 0 : index
      %c0_62 = arith.constant 0 : index
      %94 = vector.load %arg4[%c0_61, %c0_62] : memref<8x128xf32, #tpu.memory_space<vmem>>, vector<8x128xf32>
      tpu.vector_store %arg4[%c0_61, %c0_62], %93 {strides = array<i32>} : memref<8x128xf32, #tpu.memory_space<vmem>>, vector<8x128xf32>,
    } else {
    }
    %c0 = arith.constant 0 : index
    %c0_1 = arith.constant 0 : index
    %3 = vector.load %arg4[%c0, %c0_1] : memref<8x128xf32, #tpu.memory_space<vmem>>, vector<8x128xf32>
    %c0_i32_2 = arith.constant 0 : i32
    %4 = arith.index_cast %c0_i32_2 : i32 to index
    %c0_3 = arith.constant 0 : index
    %c0_4 = arith.constant 0 : index
    %5 = vector.load %arg1[%4, %c0_3, %c0_4] : memref<8x8x128xf32, #tpu.memory_space<vmem>>, vector<1x8x128xf32>
    %6 = vector.shape_cast %5 : vector<1x8x128xf32> to vector<8x128xf32>
    %c0_5 = arith.constant 0 : index
    %c0_6 = arith.constant 0 : index
    %7 = vector.load %arg2[%c0_5, %c0_6] : memref<128x128xf32, #tpu.memory_space<vmem>>, vector<128x128xf32>
    %cst = arith.constant dense<0.000000e+00> : vector<8x128xf32>
    %8 = tpu.matmul %3, %7, %cst {dimension_numbers = #tpu.dot_dimension_numbers<[1], [0], [0], [1], [0, 0, 1, 1], [], []>} : vector<8x128xf32>, vector<128x128xf32>, vector<8x128xf32> -> vector<8x128xf32>
    %9 = arith.addf %6, %8 : vector<8x128xf32>
    %10 = math.tanh %9 : vector<8x128xf32>
    %11 = arith.index_cast %c0_i32_2 : i32 to index
    %c0_7 = arith.constant 0 : index
    %c0_8 = arith.constant 0 : index
    %12 = vector.load %arg3[%11, %c0_7, %c0_8] : memref<8x8x128xf32, #tpu.memory_space<vmem>>, vector<1x8x128xf32>
    %13 = vector.shape_cast %12 : vector<1x8x128xf32> to vector<8x128xf32>
    %14 = vector.shape_cast %10 : vector<8x128xf32> to vector<1x8x128xf32>
    tpu.vector_store %arg3[%11, %c0_7, %c0_8], %14 {strides = array<i32>} : memref<8x8x128xf32, #tpu.memory_space<vmem>>, vector<1x8x128xf32>,
    %c1_i32 = arith.constant 1 : i32
    %15 = arith.index_cast %c1_i32 : i32 to index
    %c0_9 = arith.constant 0 : index
    %c0_10 = arith.constant 0 : index
    %16 = vector.load %arg1[%15, %c0_9, %c0_10] : memref<8x8x128xf32, #tpu.memory_space<vmem>>, vector<1x8x128xf32>
    %17 = vector.shape_cast %16 : vector<1x8x128xf32> to vector<8x128xf32>
    %c0_11 = arith.constant 0 : index
    %c0_12 = arith.constant 0 : index
    %18 = vector.load %arg2[%c0_11, %c0_12] : memref<128x128xf32, #tpu.memory_space<vmem>>, vector<128x128xf32>
    %cst_13 = arith.constant dense<0.000000e+00> : vector<8x128xf32>
    %19 = tpu.matmul %10, %18, %cst_13 {dimension_numbers = #tpu.dot_dimension_numbers<[1], [0], [0], [1], [0, 0, 1, 1], [], []>} : vector<8x128xf32>, vector<128x128xf32>, vector<8x128xf32> -> vector<8x128xf32>
    %20 = arith.addf %17, %19 : vector<8x128xf32>
    %21 = math.tanh %20 : vector<8x128xf32>
    %22 = arith.index_cast %c1_i32 : i32 to index
    %c0_14 = arith.constant 0 : index
    %c0_15 = arith.constant 0 : index
    %23 = vector.load %arg3[%22, %c0_14, %c0_15] : memref<8x8x128xf32, #tpu.memory_space<vmem>>, vector<1x8x128xf32>
    %24 = vector.shape_cast %23 : vector<1x8x128xf32> to vector<8x128xf32>
    %25 = vector.shape_cast %21 : vector<8x128xf32> to vector<1x8x128xf32>
    tpu.vector_store %arg3[%22, %c0_14, %c0_15], %25 {strides = array<i32>} : memref<8x8x128xf32, #tpu.memory_space<vmem>>, vector<1x8x128xf32>,
    %c2_i32 = arith.constant 2 : i32
    %26 = arith.index_cast %c2_i32 : i32 to index
    %c0_16 = arith.constant 0 : index
    %c0_17 = arith.constant 0 : index
    %27 = vector.load %arg1[%26, %c0_16, %c0_17] : memref<8x8x128xf32, #tpu.memory_space<vmem>>, vector<1x8x128xf32>
    %28 = vector.shape_cast %27 : vector<1x8x128xf32> to vector<8x128xf32>
    %c0_18 = arith.constant 0 : index
    %c0_19 = arith.constant 0 : index
    %29 = vector.load %arg2[%c0_18, %c0_19] : memref<128x128xf32, #tpu.memory_space<vmem>>, vector<128x128xf32>
    %cst_20 = arith.constant dense<0.000000e+00> : vector<8x128xf32>
    %30 = tpu.matmul %21, %29, %cst_20 {dimension_numbers = #tpu.dot_dimension_numbers<[1], [0], [0], [1], [0, 0, 1, 1], [], []>} : vector<8x128xf32>, vector<128x128xf32>, vector<8x128xf32> -> vector<8x128xf32>
    %31 = arith.addf %28, %30 : vector<8x128xf32>
    %32 = math.tanh %31 : vector<8x128xf32>
    %33 = arith.index_cast %c2_i32 : i32 to index
    %c0_21 = arith.constant 0 : index
    %c0_22 = arith.constant 0 : index
    %34 = vector.load %arg3[%33, %c0_21, %c0_22] : memref<8x8x128xf32, #tpu.memory_space<vmem>>, vector<1x8x128xf32>
    %35 = vector.shape_cast %34 : vector<1x8x128xf32> to vector<8x128xf32>
    %36 = vector.shape_cast %32 : vector<8x128xf32> to vector<1x8x128xf32>
    tpu.vector_store %arg3[%33, %c0_21, %c0_22], %36 {strides = array<i32>} : memref<8x8x128xf32, #tpu.memory_space<vmem>>, vector<1x8x128xf32>,
    %c3_i32 = arith.constant 3 : i32
    %37 = arith.index_cast %c3_i32 : i32 to index
    %c0_23 = arith.constant 0 : index
    %c0_24 = arith.constant 0 : index
    %38 = vector.load %arg1[%37, %c0_23, %c0_24] : memref<8x8x128xf32, #tpu.memory_space<vmem>>, vector<1x8x128xf32>
    %39 = vector.shape_cast %38 : vector<1x8x128xf32> to vector<8x128xf32>
    %c0_25 = arith.constant 0 : index
    %c0_26 = arith.constant 0 : index
    %40 = vector.load %arg2[%c0_25, %c0_26] : memref<128x128xf32, #tpu.memory_space<vmem>>, vector<128x128xf32>
    %cst_27 = arith.constant dense<0.000000e+00> : vector<8x128xf32>
    %41 = tpu.matmul %32, %40, %cst_27 {dimension_numbers = #tpu.dot_dimension_numbers<[1], [0], [0], [1], [0, 0, 1, 1], [], []>} : vector<8x128xf32>, vector<128x128xf32>, vector<8x128xf32> -> vector<8x128xf32>
    %42 = arith.addf %39, %41 : vector<8x128xf32>
    %43 = math.tanh %42 : vector<8x128xf32>
    %44 = arith.index_cast %c3_i32 : i32 to index
    %c0_28 = arith.constant 0 : index
    %c0_29 = arith.constant 0 : index
    %45 = vector.load %arg3[%44, %c0_28, %c0_29] : memref<8x8x128xf32, #tpu.memory_space<vmem>>, vector<1x8x128xf32>
    %46 = vector.shape_cast %45 : vector<1x8x128xf32> to vector<8x128xf32>
    %47 = vector.shape_cast %43 : vector<8x128xf32> to vector<1x8x128xf32>
    tpu.vector_store %arg3[%44, %c0_28, %c0_29], %47 {strides = array<i32>} : memref<8x8x128xf32, #tpu.memory_space<vmem>>, vector<1x8x128xf32>,
    %c4_i32 = arith.constant 4 : i32
    %48 = arith.index_cast %c4_i32 : i32 to index
    %c0_30 = arith.constant 0 : index
    %c0_31 = arith.constant 0 : index
    %49 = vector.load %arg1[%48, %c0_30, %c0_31] : memref<8x8x128xf32, #tpu.memory_space<vmem>>, vector<1x8x128xf32>
    %50 = vector.shape_cast %49 : vector<1x8x128xf32> to vector<8x128xf32>
    %c0_32 = arith.constant 0 : index
    %c0_33 = arith.constant 0 : index
    %51 = vector.load %arg2[%c0_32, %c0_33] : memref<128x128xf32, #tpu.memory_space<vmem>>, vector<128x128xf32>
    %cst_34 = arith.constant dense<0.000000e+00> : vector<8x128xf32>
    %52 = tpu.matmul %43, %51, %cst_34 {dimension_numbers = #tpu.dot_dimension_numbers<[1], [0], [0], [1], [0, 0, 1, 1], [], []>} : vector<8x128xf32>, vector<128x128xf32>, vector<8x128xf32> -> vector<8x128xf32>
    %53 = arith.addf %50, %52 : vector<8x128xf32>
    %54 = math.tanh %53 : vector<8x128xf32>
    %55 = arith.index_cast %c4_i32 : i32 to index
    %c0_35 = arith.constant 0 : index
    %c0_36 = arith.constant 0 : index
    %56 = vector.load %arg3[%55, %c0_35, %c0_36] : memref<8x8x128xf32, #tpu.memory_space<vmem>>, vector<1x8x128xf32>
    %57 = vector.shape_cast %56 : vector<1x8x128xf32> to vector<8x128xf32>
    %58 = vector.shape_cast %54 : vector<8x128xf32> to vector<1x8x128xf32>
    tpu.vector_store %arg3[%55, %c0_35, %c0_36], %58 {strides = array<i32>} : memref<8x8x128xf32, #tpu.memory_space<vmem>>, vector<1x8x128xf32>,
    %c5_i32 = arith.constant 5 : i32
    %59 = arith.index_cast %c5_i32 : i32 to index
    %c0_37 = arith.constant 0 : index
    %c0_38 = arith.constant 0 : index
    %60 = vector.load %arg1[%59, %c0_37, %c0_38] : memref<8x8x128xf32, #tpu.memory_space<vmem>>, vector<1x8x128xf32>
    %61 = vector.shape_cast %60 : vector<1x8x128xf32> to vector<8x128xf32>
    %c0_39 = arith.constant 0 : index
    %c0_40 = arith.constant 0 : index
    %62 = vector.load %arg2[%c0_39, %c0_40] : memref<128x128xf32, #tpu.memory_space<vmem>>, vector<128x128xf32>
    %cst_41 = arith.constant dense<0.000000e+00> : vector<8x128xf32>
    %63 = tpu.matmul %54, %62, %cst_41 {dimension_numbers = #tpu.dot_dimension_numbers<[1], [0], [0], [1], [0, 0, 1, 1], [], []>} : vector<8x128xf32>, vector<128x128xf32>, vector<8x128xf32> -> vector<8x128xf32>
    %64 = arith.addf %61, %63 : vector<8x128xf32>
    %65 = math.tanh %64 : vector<8x128xf32>
    %66 = arith.index_cast %c5_i32 : i32 to index
    %c0_42 = arith.constant 0 : index
    %c0_43 = arith.constant 0 : index
    %67 = vector.load %arg3[%66, %c0_42, %c0_43] : memref<8x8x128xf32, #tpu.memory_space<vmem>>, vector<1x8x128xf32>
    %68 = vector.shape_cast %67 : vector<1x8x128xf32> to vector<8x128xf32>
    %69 = vector.shape_cast %65 : vector<8x128xf32> to vector<1x8x128xf32>
    tpu.vector_store %arg3[%66, %c0_42, %c0_43], %69 {strides = array<i32>} : memref<8x8x128xf32, #tpu.memory_space<vmem>>, vector<1x8x128xf32>,
    %c6_i32 = arith.constant 6 : i32
    %70 = arith.index_cast %c6_i32 : i32 to index
    %c0_44 = arith.constant 0 : index
    %c0_45 = arith.constant 0 : index
    %71 = vector.load %arg1[%70, %c0_44, %c0_45] : memref<8x8x128xf32, #tpu.memory_space<vmem>>, vector<1x8x128xf32>
    %72 = vector.shape_cast %71 : vector<1x8x128xf32> to vector<8x128xf32>
    %c0_46 = arith.constant 0 : index
    %c0_47 = arith.constant 0 : index
    %73 = vector.load %arg2[%c0_46, %c0_47] : memref<128x128xf32, #tpu.memory_space<vmem>>, vector<128x128xf32>
    %cst_48 = arith.constant dense<0.000000e+00> : vector<8x128xf32>
    %74 = tpu.matmul %65, %73, %cst_48 {dimension_numbers = #tpu.dot_dimension_numbers<[1], [0], [0], [1], [0, 0, 1, 1], [], []>} : vector<8x128xf32>, vector<128x128xf32>, vector<8x128xf32> -> vector<8x128xf32>
    %75 = arith.addf %72, %74 : vector<8x128xf32>
    %76 = math.tanh %75 : vector<8x128xf32>
    %77 = arith.index_cast %c6_i32 : i32 to index
    %c0_49 = arith.constant 0 : index
    %c0_50 = arith.constant 0 : index
    %78 = vector.load %arg3[%77, %c0_49, %c0_50] : memref<8x8x128xf32, #tpu.memory_space<vmem>>, vector<1x8x128xf32>
    %79 = vector.shape_cast %78 : vector<1x8x128xf32> to vector<8x128xf32>
    %80 = vector.shape_cast %76 : vector<8x128xf32> to vector<1x8x128xf32>
    tpu.vector_store %arg3[%77, %c0_49, %c0_50], %80 {strides = array<i32>} : memref<8x8x128xf32, #tpu.memory_space<vmem>>, vector<1x8x128xf32>,
    %c7_i32 = arith.constant 7 : i32
    %81 = arith.index_cast %c7_i32 : i32 to index
    %c0_51 = arith.constant 0 : index
    %c0_52 = arith.constant 0 : index
    %82 = vector.load %arg1[%81, %c0_51, %c0_52] : memref<8x8x128xf32, #tpu.memory_space<vmem>>, vector<1x8x128xf32>
    %83 = vector.shape_cast %82 : vector<1x8x128xf32> to vector<8x128xf32>
    %c0_53 = arith.constant 0 : index
    %c0_54 = arith.constant 0 : index
    %84 = vector.load %arg2[%c0_53, %c0_54] : memref<128x128xf32, #tpu.memory_space<vmem>>, vector<128x128xf32>
    %cst_55 = arith.constant dense<0.000000e+00> : vector<8x128xf32>
    %85 = tpu.matmul %76, %84, %cst_55 {dimension_numbers = #tpu.dot_dimension_numbers<[1], [0], [0], [1], [0, 0, 1, 1], [], []>} : vector<8x128xf32>, vector<128x128xf32>, vector<8x128xf32> -> vector<8x128xf32>
    %86 = arith.addf %83, %85 : vector<8x128xf32>
    %87 = math.tanh %86 : vector<8x128xf32>
    %88 = arith.index_cast %c7_i32 : i32 to index
    %c0_56 = arith.constant 0 : index
    %c0_57 = arith.constant 0 : index
    %89 = vector.load %arg3[%88, %c0_56, %c0_57] : memref<8x8x128xf32, #tpu.memory_space<vmem>>, vector<1x8x128xf32>
    %90 = vector.shape_cast %89 : vector<1x8x128xf32> to vector<8x128xf32>
    %91 = vector.shape_cast %87 : vector<8x128xf32> to vector<1x8x128xf32>
    tpu.vector_store %arg3[%88, %c0_56, %c0_57], %91 {strides = array<i32>} : memref<8x8x128xf32, #tpu.memory_space<vmem>>, vector<1x8x128xf32>,
    %c8_i32 = arith.constant 8 : i32
    %c0_58 = arith.constant 0 : index
    %c0_59 = arith.constant 0 : index
    %92 = vector.load %arg4[%c0_58, %c0_59] : memref<8x128xf32, #tpu.memory_space<vmem>>, vector<8x128xf32>
    tpu.vector_store %arg4[%c0_58, %c0_59], %87 {strides = array<i32>} : memref<8x128xf32, #tpu.memory_space<vmem>>, vector<8x128xf32>,
    return
  }
  func.func @transform_0(%arg0: i32) -> (i32, i32, i32) {
    %c0_i32 = arith.constant 0 : i32
    %c0_i32_0 = arith.constant 0 : i32
    %c0_i32_1 = arith.constant 0 : i32
    return %arg0, %c0_i32, %c0_i32_0 : i32, i32, i32
  }
  func.func @transform_1(%arg0: i32) -> (i32, i32) {
    %c0_i32 = arith.constant 0 : i32
    %c0_i32_0 = arith.constant 0 : i32
    %c0_i32_1 = arith.constant 0 : i32
    return %c0_i32, %c0_i32_0 : i32, i32
  }
  func.func @transform_2(%arg0: i32) -> (i32, i32, i32) {
    %c0_i32 = arith.constant 0 : i32
    %c0_i32_0 = arith.constant 0 : i32
    %c0_i32_1 = arith.constant 0 : i32
    return %arg0, %c0_i32, %c0_i32_0 : i32, i32, i32
  }
}

</mosaic_0001>

<llo_original>
// kernel: rnn_forward.1
$region0: #{rnn_forward.1}
  #allocation0 [shape = 'u32[]', space=smem, size = 0x4, offset = 0x4, fixed_abs, tag = 'smem constant byte address 0x4 - core index']
  #allocation1 [shape = 'u32[72,128]{1,0:T(1,128)}', space=vmem, size = 0x9000, scoped, tag = 'internal scratch']
  #allocation2 [shape = 'f32[8,128]{1,0:T(8,128)}', space=vmem, size = 0x1000, scoped, tag = 'scratch operand']
  %s0 = inlined_call_operand.vmem [shape: f32[8,8,128], index: 0, kind: input, shape index: {}]
  %s1 = inlined_call_operand.vmem [shape: f32[128,128], index: 1, kind: input, shape index: {}]
  %s2 = inlined_call_operand.vmem [shape: f32[8,8,128], index: 2, kind: output, shape index: {}]
  %s3 = sld [smem:[#allocation0]]
  $region22: #{rnn_forward.1} parent=0
    _
  %s5 = ssub.s32 1, %s3
  %s6 = scalar_select 0, %s5, %s3
  // Predicated region
  $region2: #{rnn_forward.1} parent=0 // pred_check
    _
  $region3: #{rnn_forward.1} parent=0 // pred_check_branch
    %8 = sbr.rel (0) target = $region5
  $region4: #{rnn_forward.1} parent=0 // pred_region
    _
  $region5: #{rnn_forward.1} parent=0 // pred_fallthru
    _
  // Predicated region
  $region6: #{rnn_forward.1} parent=0 // pred_check
    _
  $region7: #{rnn_forward.1} parent=0 // pred_check_branch
    %10 = sbr.rel (0) target = $region9
  $region8: #{rnn_forward.1} parent=0 // pred_region
    _
  $region9: #{rnn_forward.1} parent=0 // pred_fallthru
    _
  %p11 = scmp.eq.s32.totalorder 0, 0
  // Predicated region
  $region10: #{rnn_forward.1} parent=0 // pred_check
    %p12 = pneg %p11
  $region11: #{rnn_forward.1} parent=0 // pred_check_branch
    %14 = sbr.rel (%p12) target = $region13
  $region12: #{rnn_forward.1} parent=0 // pred_region
    %15 = vst [vmem:[#allocation2] sm:$0xff] 0.0
  $region13: #{rnn_forward.1} parent=0 // pred_fallthru
    _
  %v16 = vld [vmem:[#allocation2] sm:$0xff]
  %v17 = vld [vmem:[%s0] sm:$0xff]
  %v18 = vld [vmem:[%s1] sm:$0xff]
  %v19 = vld [vmem:[%s1 + $0x8] sm:$0xff]
  %v20 = vld [vmem:[%s1 + $0x10] sm:$0xff]
  %v21 = vld [vmem:[%s1 + $0x18] sm:$0xff]
  %v22 = vld [vmem:[%s1 + $0x20] sm:$0xff]
  %v23 = vld [vmem:[%s1 + $0x28] sm:$0xff]
  %v24 = vld [vmem:[%s1 + $0x30] sm:$0xff]
  %v25 = vld [vmem:[%s1 + $0x38] sm:$0xff]
  %v26 = vld [vmem:[%s1 + $0x40] sm:$0xff]
  %v27 = vld [vmem:[%s1 + $0x48] sm:$0xff]
  %v28 = vld [vmem:[%s1 + $0x50] sm:$0xff]
  %v29 = vld [vmem:[%s1 + $0x58] sm:$0xff]
  %v30 = vld [vmem:[%s1 + $0x60] sm:$0xff]
  %v31 = vld [vmem:[%s1 + $0x68] sm:$0xff]
  %v32 = vld [vmem:[%s1 + $0x70] sm:$0xff]
  %v33 = vld [vmem:[%s1 + $0x78] sm:$0xff]
  %34 = vmatpush.msra.mxu0 %v33
  %35 = vmatpush.msra.mxu0 %v32
  %36 = vmatpush.msra.mxu0 %v31
  %37 = vmatpush.msra.mxu0 %v30
  %38 = vmatpush.msra.mxu0 %v29
  %39 = vmatpush.msra.mxu0 %v28
  %40 = vmatpush.msra.mxu0 %v27
  %41 = vmatpush.msra.mxu0 %v26
  %42 = vmatpush.msra.mxu0 %v25
  %43 = vmatpush.msra.mxu0 %v24
  %44 = vmatpush.msra.mxu0 %v23
  %45 = vmatpush.msra.mxu0 %v22
  %46 = vmatpush.msra.mxu0 %v21
  %47 = vmatpush.msra.mxu0 %v20
  %48 = vmatpush.msra.mxu0 %v19
  %49 = vmatpush.msra.mxu0 %v18
  %50 = vmatmul.f32.gmra.mxu0 %v16
  %v51 = vpop.f32.mrf.mxu0
  %v52 = vadd.f32 0.0, %v51
  %53 = vdwg.mxu0
  %v54 = vadd.f32 %v17, %v52
  %v55 = vtanh.pop %v54
  %56 = vst [vmem:[%s2] sm:$0xff] %v55
  %s57 = scalar_lea.vmem %s0, 8
  %v58 = vld [vmem:[%s57] sm:$0xff]
  %v59 = vld [vmem:[%s1] sm:$0xff]
  %v60 = vld [vmem:[%s1 + $0x8] sm:$0xff]
  %v61 = vld [vmem:[%s1 + $0x10] sm:$0xff]
  %v62 = vld [vmem:[%s1 + $0x18] sm:$0xff]
  %v63 = vld [vmem:[%s1 + $0x20] sm:$0xff]
  %v64 = vld [vmem:[%s1 + $0x28] sm:$0xff]
  %v65 = vld [vmem:[%s1 + $0x30] sm:$0xff]
  %v66 = vld [vmem:[%s1 + $0x38] sm:$0xff]
  %v67 = vld [vmem:[%s1 + $0x40] sm:$0xff]
  %v68 = vld [vmem:[%s1 + $0x48] sm:$0xff]
  %v69 = vld [vmem:[%s1 + $0x50] sm:$0xff]
  %v70 = vld [vmem:[%s1 + $0x58] sm:$0xff]
  %v71 = vld [vmem:[%s1 + $0x60] sm:$0xff]
  %v72 = vld [vmem:[%s1 + $0x68] sm:$0xff]
  %v73 = vld [vmem:[%s1 + $0x70] sm:$0xff]
  %v74 = vld [vmem:[%s1 + $0x78] sm:$0xff]
  %75 = vmatpush.msra.mxu0 %v74
  %76 = vmatpush.msra.mxu0 %v73
  %77 = vmatpush.msra.mxu0 %v72
  %78 = vmatpush.msra.mxu0 %v71
  %79 = vmatpush.msra.mxu0 %v70
  %80 = vmatpush.msra.mxu0 %v69
  %81 = vmatpush.msra.mxu0 %v68
  %82 = vmatpush.msra.mxu0 %v67
  %83 = vmatpush.msra.mxu0 %v66
  %84 = vmatpush.msra.mxu0 %v65
  %85 = vmatpush.msra.mxu0 %v64
  %86 = vmatpush.msra.mxu0 %v63
  %87 = vmatpush.msra.mxu0 %v62
  %88 = vmatpush.msra.mxu0 %v61
  %89 = vmatpush.msra.mxu0 %v60
  %90 = vmatpush.msra.mxu0 %v59
  %91 = vmatmul.f32.gmra.mxu0 %v55
  %v92 = vpop.f32.mrf.mxu0
  %v93 = vadd.f32 0.0, %v92
  %94 = vdwg.mxu0
  %v95 = vadd.f32 %v58, %v93
  %v96 = vtanh.pop %v95
  %s97 = scalar_lea.vmem %s2, 8
  %98 = vst [vmem:[%s97] sm:$0xff] %v96
  %s99 = scalar_lea.vmem %s0, 16
  %v100 = vld [vmem:[%s99] sm:$0xff]
  %v101 = vld [vmem:[%s1] sm:$0xff]
  %v102 = vld [vmem:[%s1 + $0x8] sm:$0xff]
  %v103 = vld [vmem:[%s1 + $0x10] sm:$0xff]
  %v104 = vld [vmem:[%s1 + $0x18] sm:$0xff]
  %v105 = vld [vmem:[%s1 + $0x20] sm:$0xff]
  %v106 = vld [vmem:[%s1 + $0x28] sm:$0xff]
  %v107 = vld [vmem:[%s1 + $0x30] sm:$0xff]
  %v108 = vld [vmem:[%s1 + $0x38] sm:$0xff]
  %v109 = vld [vmem:[%s1 + $0x40] sm:$0xff]
  %v110 = vld [vmem:[%s1 + $0x48] sm:$0xff]
  %v111 = vld [vmem:[%s1 + $0x50] sm:$0xff]
  %v112 = vld [vmem:[%s1 + $0x58] sm:$0xff]
  %v113 = vld [vmem:[%s1 + $0x60] sm:$0xff]
  %v114 = vld [vmem:[%s1 + $0x68] sm:$0xff]
  %v115 = vld [vmem:[%s1 + $0x70] sm:$0xff]
  %v116 = vld [vmem:[%s1 + $0x78] sm:$0xff]
  %117 = vmatpush.msra.mxu0 %v116
  %118 = vmatpush.msra.mxu0 %v115
  %119 = vmatpush.msra.mxu0 %v114
  %120 = vmatpush.msra.mxu0 %v113
  %121 = vmatpush.msra.mxu0 %v112
  %122 = vmatpush.msra.mxu0 %v111
  %123 = vmatpush.msra.mxu0 %v110
  %124 = vmatpush.msra.mxu0 %v109
  %125 = vmatpush.msra.mxu0 %v108
  %126 = vmatpush.msra.mxu0 %v107
  %127 = vmatpush.msra.mxu0 %v106
  %128 = vmatpush.msra.mxu0 %v105
  %129 = vmatpush.msra.mxu0 %v104
  %130 = vmatpush.msra.mxu0 %v103
  %131 = vmatpush.msra.mxu0 %v102
  %132 = vmatpush.msra.mxu0 %v101
  %133 = vmatmul.f32.gmra.mxu0 %v96
  %v134 = vpop.f32.mrf.mxu0
  %v135 = vadd.f32 0.0, %v134
  %136 = vdwg.mxu0
  %v137 = vadd.f32 %v100, %v135
  %v138 = vtanh.pop %v137
  %s139 = scalar_lea.vmem %s2, 16
  %140 = vst [vmem:[%s139] sm:$0xff] %v138
  %s141 = scalar_lea.vmem %s0, 24
  %v142 = vld [vmem:[%s141] sm:$0xff]
  %v143 = vld [vmem:[%s1] sm:$0xff]
  %v144 = vld [vmem:[%s1 + $0x8] sm:$0xff]
  %v145 = vld [vmem:[%s1 + $0x10] sm:$0xff]
  %v146 = vld [vmem:[%s1 + $0x18] sm:$0xff]
  %v147 = vld [vmem:[%s1 + $0x20] sm:$0xff]
  %v148 = vld [vmem:[%s1 + $0x28] sm:$0xff]
  %v149 = vld [vmem:[%s1 + $0x30] sm:$0xff]
  %v150 = vld [vmem:[%s1 + $0x38] sm:$0xff]
  %v151 = vld [vmem:[%s1 + $0x40] sm:$0xff]
  %v152 = vld [vmem:[%s1 + $0x48] sm:$0xff]
  %v153 = vld [vmem:[%s1 + $0x50] sm:$0xff]
  %v154 = vld [vmem:[%s1 + $0x58] sm:$0xff]
  %v155 = vld [vmem:[%s1 + $0x60] sm:$0xff]
  %v156 = vld [vmem:[%s1 + $0x68] sm:$0xff]
  %v157 = vld [vmem:[%s1 + $0x70] sm:$0xff]
  %v158 = vld [vmem:[%s1 + $0x78] sm:$0xff]
  %159 = vmatpush.msra.mxu0 %v158
  %160 = vmatpush.msra.mxu0 %v157
  %161 = vmatpush.msra.mxu0 %v156
  %162 = vmatpush.msra.mxu0 %v155
  %163 = vmatpush.msra.mxu0 %v154
  %164 = vmatpush.msra.mxu0 %v153
  %165 = vmatpush.msra.mxu0 %v152
  %166 = vmatpush.msra.mxu0 %v151
  %167 = vmatpush.msra.mxu0 %v150
  %168 = vmatpush.msra.mxu0 %v149
  %169 = vmatpush.msra.mxu0 %v148
  %170 = vmatpush.msra.mxu0 %v147
  %171 = vmatpush.msra.mxu0 %v146
  %172 = vmatpush.msra.mxu0 %v145
  %173 = vmatpush.msra.mxu0 %v144
  %174 = vmatpush.msra.mxu0 %v143
  %175 = vmatmul.f32.gmra.mxu0 %v138
  %v176 = vpop.f32.mrf.mxu0
  %v177 = vadd.f32 0.0, %v176
  %178 = vdwg.mxu0
  %v179 = vadd.f32 %v142, %v177
  %v180 = vtanh.pop %v179
  %s181 = scalar_lea.vmem %s2, 24
  %182 = vst [vmem:[%s181] sm:$0xff] %v180
  %s183 = scalar_lea.vmem %s0, 32
  %v184 = vld [vmem:[%s183] sm:$0xff]
  %v185 = vld [vmem:[%s1] sm:$0xff]
  %v186 = vld [vmem:[%s1 + $0x8] sm:$0xff]
  %v187 = vld [vmem:[%s1 + $0x10] sm:$0xff]
  %v188 = vld [vmem:[%s1 + $0x18] sm:$0xff]
  %v189 = vld [vmem:[%s1 + $0x20] sm:$0xff]
  %v190 = vld [vmem:[%s1 + $0x28] sm:$0xff]
  %v191 = vld [vmem:[%s1 + $0x30] sm:$0xff]
  %v192 = vld [vmem:[%s1 + $0x38] sm:$0xff]
  %v193 = vld [vmem:[%s1 + $0x40] sm:$0xff]
  %v194 = vld [vmem:[%s1 + $0x48] sm:$0xff]
  %v195 = vld [vmem:[%s1 + $0x50] sm:$0xff]
  %v196 = vld [vmem:[%s1 + $0x58] sm:$0xff]
  %v197 = vld [vmem:[%s1 + $0x60] sm:$0xff]
  %v198 = vld [vmem:[%s1 + $0x68] sm:$0xff]
  %v199 = vld [vmem:[%s1 + $0x70] sm:$0xff]
  %v200 = vld [vmem:[%s1 + $0x78] sm:$0xff]
  %201 = vmatpush.msra.mxu0 %v200
  %202 = vmatpush.msra.mxu0 %v199
  %203 = vmatpush.msra.mxu0 %v198
  %204 = vmatpush.msra.mxu0 %v197
  %205 = vmatpush.msra.mxu0 %v196
  %206 = vmatpush.msra.mxu0 %v195
  %207 = vmatpush.msra.mxu0 %v194
  %208 = vmatpush.msra.mxu0 %v193
  %209 = vmatpush.msra.mxu0 %v192
  %210 = vmatpush.msra.mxu0 %v191
  %211 = vmatpush.msra.mxu0 %v190
  %212 = vmatpush.msra.mxu0 %v189
  %213 = vmatpush.msra.mxu0 %v188
  %214 = vmatpush.msra.mxu0 %v187
  %215 = vmatpush.msra.mxu0 %v186
  %216 = vmatpush.msra.mxu0 %v185
  %217 = vmatmul.f32.gmra.mxu0 %v180
  %v218 = vpop.f32.mrf.mxu0
  %v219 = vadd.f32 0.0, %v218
  %220 = vdwg.mxu0
  %v221 = vadd.f32 %v184, %v219
  %v222 = vtanh.pop %v221
  %s223 = scalar_lea.vmem %s2, 32
  %224 = vst [vmem:[%s223] sm:$0xff] %v222
  %s225 = scalar_lea.vmem %s0, 40
  %v226 = vld [vmem:[%s225] sm:$0xff]
  %v227 = vld [vmem:[%s1] sm:$0xff]
  %v228 = vld [vmem:[%s1 + $0x8] sm:$0xff]
  %v229 = vld [vmem:[%s1 + $0x10] sm:$0xff]
  %v230 = vld [vmem:[%s1 + $0x18] sm:$0xff]
  %v231 = vld [vmem:[%s1 + $0x20] sm:$0xff]
  %v232 = vld [vmem:[%s1 + $0x28] sm:$0xff]
  %v233 = vld [vmem:[%s1 + $0x30] sm:$0xff]
  %v234 = vld [vmem:[%s1 + $0x38] sm:$0xff]
  %v235 = vld [vmem:[%s1 + $0x40] sm:$0xff]
  %v236 = vld [vmem:[%s1 + $0x48] sm:$0xff]
  %v237 = vld [vmem:[%s1 + $0x50] sm:$0xff]
  %v238 = vld [vmem:[%s1 + $0x58] sm:$0xff]
  %v239 = vld [vmem:[%s1 + $0x60] sm:$0xff]
  %v240 = vld [vmem:[%s1 + $0x68] sm:$0xff]
  %v241 = vld [vmem:[%s1 + $0x70] sm:$0xff]
  %v242 = vld [vmem:[%s1 + $0x78] sm:$0xff]
  %243 = vmatpush.msra.mxu0 %v242
  %244 = vmatpush.msra.mxu0 %v241
  %245 = vmatpush.msra.mxu0 %v240
  %246 = vmatpush.msra.mxu0 %v239
  %247 = vmatpush.msra.mxu0 %v238
  %248 = vmatpush.msra.mxu0 %v237
  %249 = vmatpush.msra.mxu0 %v236
  %250 = vmatpush.msra.mxu0 %v235
  %251 = vmatpush.msra.mxu0 %v234
  %252 = vmatpush.msra.mxu0 %v233
  %253 = vmatpush.msra.mxu0 %v232
  %254 = vmatpush.msra.mxu0 %v231
  %255 = vmatpush.msra.mxu0 %v230
  %256 = vmatpush.msra.mxu0 %v229
  %257 = vmatpush.msra.mxu0 %v228
  %258 = vmatpush.msra.mxu0 %v227
  %259 = vmatmul.f32.gmra.mxu0 %v222
  %v260 = vpop.f32.mrf.mxu0
  %v261 = vadd.f32 0.0, %v260
  %262 = vdwg.mxu0
  %v263 = vadd.f32 %v226, %v261
  %v264 = vtanh.pop %v263
  %s265 = scalar_lea.vmem %s2, 40
  %266 = vst [vmem:[%s265] sm:$0xff] %v264
  %s267 = scalar_lea.vmem %s0, 48
  %v268 = vld [vmem:[%s267] sm:$0xff]
  %v269 = vld [vmem:[%s1] sm:$0xff]
  %v270 = vld [vmem:[%s1 + $0x8] sm:$0xff]
  %v271 = vld [vmem:[%s1 + $0x10] sm:$0xff]
  %v272 = vld [vmem:[%s1 + $0x18] sm:$0xff]
  %v273 = vld [vmem:[%s1 + $0x20] sm:$0xff]
  %v274 = vld [vmem:[%s1 + $0x28] sm:$0xff]
  %v275 = vld [vmem:[%s1 + $0x30] sm:$0xff]
  %v276 = vld [vmem:[%s1 + $0x38] sm:$0xff]
  %v277 = vld [vmem:[%s1 + $0x40] sm:$0xff]
  %v278 = vld [vmem:[%s1 + $0x48] sm:$0xff]
  %v279 = vld [vmem:[%s1 + $0x50] sm:$0xff]
  %v280 = vld [vmem:[%s1 + $0x58] sm:$0xff]
  %v281 = vld [vmem:[%s1 + $0x60] sm:$0xff]
  %v282 = vld [vmem:[%s1 + $0x68] sm:$0xff]
  %v283 = vld [vmem:[%s1 + $0x70] sm:$0xff]
  %v284 = vld [vmem:[%s1 + $0x78] sm:$0xff]
  %285 = vmatpush.msra.mxu0 %v284
  %286 = vmatpush.msra.mxu0 %v283
  %287 = vmatpush.msra.mxu0 %v282
  %288 = vmatpush.msra.mxu0 %v281
  %289 = vmatpush.msra.mxu0 %v280
  %290 = vmatpush.msra.mxu0 %v279
  %291 = vmatpush.msra.mxu0 %v278
  %292 = vmatpush.msra.mxu0 %v277
  %293 = vmatpush.msra.mxu0 %v276
  %294 = vmatpush.msra.mxu0 %v275
  %295 = vmatpush.msra.mxu0 %v274
  %296 = vmatpush.msra.mxu0 %v273
  %297 = vmatpush.msra.mxu0 %v272
  %298 = vmatpush.msra.mxu0 %v271
  %299 = vmatpush.msra.mxu0 %v270
  %300 = vmatpush.msra.mxu0 %v269
  %301 = vmatmul.f32.gmra.mxu0 %v264
  %v302 = vpop.f32.mrf.mxu0
  %v303 = vadd.f32 0.0, %v302
  %304 = vdwg.mxu0
  %v305 = vadd.f32 %v268, %v303
  %v306 = vtanh.pop %v305
  %s307 = scalar_lea.vmem %s2, 48
  %308 = vst [vmem:[%s307] sm:$0xff] %v306
  %s309 = scalar_lea.vmem %s0, 56
  %v310 = vld [vmem:[%s309] sm:$0xff]
  %v311 = vld [vmem:[%s1] sm:$0xff]
  %v312 = vld [vmem:[%s1 + $0x8] sm:$0xff]
  %v313 = vld [vmem:[%s1 + $0x10] sm:$0xff]
  %v314 = vld [vmem:[%s1 + $0x18] sm:$0xff]
  %v315 = vld [vmem:[%s1 + $0x20] sm:$0xff]
  %v316 = vld [vmem:[%s1 + $0x28] sm:$0xff]
  %v317 = vld [vmem:[%s1 + $0x30] sm:$0xff]
  %v318 = vld [vmem:[%s1 + $0x38] sm:$0xff]
  %v319 = vld [vmem:[%s1 + $0x40] sm:$0xff]
  %v320 = vld [vmem:[%s1 + $0x48] sm:$0xff]
  %v321 = vld [vmem:[%s1 + $0x50] sm:$0xff]
  %v322 = vld [vmem:[%s1 + $0x58] sm:$0xff]
  %v323 = vld [vmem:[%s1 + $0x60] sm:$0xff]
  %v324 = vld [vmem:[%s1 + $0x68] sm:$0xff]
  %v325 = vld [vmem:[%s1 + $0x70] sm:$0xff]
  %v326 = vld [vmem:[%s1 + $0x78] sm:$0xff]
  %327 = vmatpush.msra.mxu0 %v326
  %328 = vmatpush.msra.mxu0 %v325
  %329 = vmatpush.msra.mxu0 %v324
  %330 = vmatpush.msra.mxu0 %v323
  %331 = vmatpush.msra.mxu0 %v322
  %332 = vmatpush.msra.mxu0 %v321
  %333 = vmatpush.msra.mxu0 %v320
  %334 = vmatpush.msra.mxu0 %v319
  %335 = vmatpush.msra.mxu0 %v318
  %336 = vmatpush.msra.mxu0 %v317
  %337 = vmatpush.msra.mxu0 %v316
  %338 = vmatpush.msra.mxu0 %v315
  %339 = vmatpush.msra.mxu0 %v314
  %340 = vmatpush.msra.mxu0 %v313
  %341 = vmatpush.msra.mxu0 %v312
  %342 = vmatpush.msra.mxu0 %v311
  %343 = vmatmul.f32.gmra.mxu0 %v306
  %v344 = vpop.f32.mrf.mxu0
  %v345 = vadd.f32 0.0, %v344
  %346 = vdwg.mxu0
  %v347 = vadd.f32 %v310, %v345
  %v348 = vtanh.pop %v347
  %s349 = scalar_lea.vmem %s2, 56
  %350 = vst [vmem:[%s349] sm:$0xff] %v348
  %351 = vst [vmem:[#allocation2] sm:$0xff] %v348
  // Predicated region
  $region14: #{rnn_forward.1} parent=0 // pred_check
    _
  $region15: #{rnn_forward.1} parent=0 // pred_check_branch
    %353 = sbr.rel (0) target = $region17
  $region16: #{rnn_forward.1} parent=0 // pred_region
    _
  $region17: #{rnn_forward.1} parent=0 // pred_fallthru
    _
  // Predicated region
  $region18: #{rnn_forward.1} parent=0 // pred_check
    _
  $region19: #{rnn_forward.1} parent=0 // pred_check_branch
    %355 = sbr.rel (0) target = $region21
  $region20: #{rnn_forward.1} parent=0 // pred_region
    _
  $region21: #{rnn_forward.1} parent=0 // pred_fallthru
    _

</llo_original>
